<compile_context>
chip_gen: v6e
topology: v6e:2x2x1
jax: 0.10.0
libtpu: 0.0.40
codegen_flags: <defaults>
</compile_context>

<pallas_src>
import jax
import jax.numpy as jnp
from jax.experimental import pallas as pl
from jax.experimental.pallas import tpu as pltpu


def _linear_kernel(x_ref, w_ref, b_ref, o_ref, acc_ref):
    # Grid = (N tiles [parallel], F tiles [arbitrary / reduction, last]).
    k = pl.program_id(1)

    @pl.when(k == 0)
    def _():
        acc_ref[...] = jnp.zeros_like(acc_ref)

    # 1-output-column contraction: keep it off the MXU (would use 1 of 256
    # result lanes); VPU multiply + cross-lane reduce, accumulated in f32.
    acc_ref[...] += jnp.sum(
        x_ref[...].astype(jnp.float32) * w_ref[...].astype(jnp.float32),
        axis=-1,
        keepdims=True,
    )

    @pl.when(k == pl.num_programs(1) - 1)
    def _():
        # Scalar bias read from SMEM, broadcast over the (TN, 1) tile.
        o_ref[...] = (acc_ref[...] + b_ref[0, 0]).astype(o_ref.dtype)


def _choose_tiles(n, f, itemsize, x_tile_bytes=4 * 1024 * 1024):
    """Pick (TN, TF) so the double-buffered x tile fits every generation."""
    # F tile: a multiple of 128 that divides F (keeps padded-column garbage out
    # of the accumulation), otherwise the full F (always a legal block).
    tf = f
    if f > 2048:
        for cand in (2048, 1024, 512, 256, 128):
            if f % cand == 0:
                tf = cand
                break

    # N tile: multiple of 8, sized to ~x_tile_bytes (double-buffered -> ~8 MiB,
    # inside v5e's 16 MiB and v6e/v7x's 32 MiB scoped-VMEM defaults).
    tn_budget = max(8, (x_tile_bytes // (tf * itemsize)) // 8 * 8)
    tn = n if n <= tn_budget else tn_budget   # full-N block is legal for any n
    return tn, tf


def linear_net_forward(x, weight, bias):
    """Pallas equivalent of LinearNet.forward.

    Args:
      x:      (N, F) float32
      weight: (1, F) float32  (PyTorch nn.Linear weight layout)
      bias:   (1,)   float32
    Returns:
      y: (N, 1) float32
    """
    n, f = x.shape
    w_row = weight.reshape(1, f)            # (1, F) row, broadcast over TN rows
    b = bias.reshape(1, 1)                  # scalar in SMEM

    tn, tf = _choose_tiles(n, f, jnp.dtype(x.dtype).itemsize)
    grid = (pl.cdiv(n, tn), f // tf)        # F axis last (reduction convention)

    return pl.pallas_call(
        _linear_kernel,
        out_shape=jax.ShapeDtypeStruct((n, 1), x.dtype),
        grid_spec=pltpu.PrefetchScalarGridSpec(
            num_scalar_prefetch=0,
            grid=grid,
            in_specs=[
                pl.BlockSpec((tn, tf), lambda i, k: (i, k)),     # x tile (streamed)
                pl.BlockSpec((1, tf), lambda i, k: (0, k)),      # weight row chunk
                pl.BlockSpec(memory_space=pltpu.MemorySpace.SMEM),  # bias scalar
            ],
            out_specs=pl.BlockSpec((tn, 1), lambda i, k: (i, 0)),
            scratch_shapes=[pltpu.VMEM((tn, 1), jnp.float32)],   # resident accumulator
        ),
        compiler_params=pltpu.CompilerParams(
            # N tiles are independent -> megacore-shardable on v7x; F is the
            # reduction axis (accumulator resident across it).
            dimension_semantics=("parallel", "arbitrary"),
            vmem_limit_bytes=32 * 1024 * 1024,
        ),
    )(x, w_row, b)


if __name__ == "__main__":
    # Small shapes consistent with the module: batch=8 samples, n_feature=32.
    n_feature = 32
    batch = 8

    key = jax.random.PRNGKey(0)
    kx, kw, kb = jax.random.split(key, 3)

    # Deterministic parameter init (PyTorch nn.Linear default: U(-1/sqrt(F), 1/sqrt(F))).
    bound = 1.0 / jnp.sqrt(jnp.float32(n_feature))
    weight = jax.random.uniform(kw, (1, n_feature), jnp.float32, -bound, bound)
    bias = jax.random.uniform(kb, (1,), jnp.float32, -bound, bound)

    x = jax.random.normal(kx, (batch, n_feature), jnp.float32)

    y = linear_net_forward(x, weight, bias)
    y = jax.block_until_ready(y)

    # Reference check against plain JAX (y = x @ W^T + b).
    y_ref = x @ weight.T + bias
    assert y.shape == (batch, 1)
    assert jnp.allclose(y, y_ref, atol=1e-5, rtol=1e-5)

    print("KERNEL_OK")
</pallas_src>

<mosaic_0001>
module attributes {stable_mosaic.version = 11 : i64} {
  func.func @_linear_kernel(%arg0: i32, %arg1: i32, %arg2: memref<8x32xf32, #tpu.memory_space<vmem>>, %arg3: memref<1x32xf32, #tpu.memory_space<vmem>>, %arg4: memref<1x1xf32, #tpu.memory_space<smem>>, %arg5: memref<8x1xf32, #tpu.memory_space<vmem>>, %arg6: memref<8x1xf32, #tpu.memory_space<vmem>>) attributes {dimension_semantics = [#tpu.dimension_semantics<parallel>, #tpu.dimension_semantics<arbitrary>], iteration_bounds = array<i64: 1, 1>, scalar_prefetch = 0 : i64, scratch_operands = 1 : i64, tpu.core_type = #tpu.core_type<tc>, window_params = [{transform_indices = @transform_0, window_bounds = array<i64: 8, 32>}, {transform_indices = @transform_1, window_bounds = array<i64: 1, 32>}, {transform_indices = @transform_2, window_bounds = array<i64: 1, 1>}, {transform_indices = @transform_3, window_bounds = array<i64: 8, 1>}]} {
    %c0_i32 = arith.constant 0 : i32
    %0 = arith.cmpi eq, %arg1, %c0_i32 : i32
    %1 = arith.extui %0 : i1 to i32
    %c0_i32_0 = arith.constant 0 : i32
    %2 = arith.cmpi ne, %1, %c0_i32_0 : i32
    scf.if %2 {
      %cst_10 = arith.constant 0.000000e+00 : f32
      %15 = vector.broadcast %cst_10 : f32 to vector<8x1xf32>
      %c0_11 = arith.constant 0 : index
      %c0_12 = arith.constant 0 : index
      %16 = vector.load %arg6[%c0_11, %c0_12] : memref<8x1xf32, #tpu.memory_space<vmem>>, vector<8x1xf32>
      tpu.vector_store %arg6[%c0_11, %c0_12], %15 {strides = array<i32>} : memref<8x1xf32, #tpu.memory_space<vmem>>, vector<8x1xf32>,
    } else {
    }
    %c0 = arith.constant 0 : index
    %c0_1 = arith.constant 0 : index
    %3 = vector.load %arg6[%c0, %c0_1] : memref<8x1xf32, #tpu.memory_space<vmem>>, vector<8x1xf32>
    %c0_2 = arith.constant 0 : index
    %c0_3 = arith.constant 0 : index
    %4 = vector.load %arg2[%c0_2, %c0_3] : memref<8x32xf32, #tpu.memory_space<vmem>>, vector<8x32xf32>
    %c0_4 = arith.constant 0 : index
    %c0_5 = arith.constant 0 : index
    %5 = vector.load %arg3[%c0_4, %c0_5] : memref<1x32xf32, #tpu.memory_space<vmem>>, vector<1x32xf32>
    %6 = vector.broadcast %5 : vector<1x32xf32> to vector<8x32xf32>
    %7 = arith.mulf %4, %6 : vector<8x32xf32>
    %cst = arith.constant dense<0.000000e+00> : vector<8xf32>
    %8 = vector.multi_reduction <add>, %7, %cst [1] : vector<8x32xf32> to vector<8xf32>
    %9 = vector.shape_cast %8 : vector<8xf32> to vector<8x1xf32>
    %10 = arith.addf %3, %9 : vector<8x1xf32>
    %c0_6 = arith.constant 0 : index
    %c0_7 = arith.constant 0 : index
    %11 = vector.load %arg6[%c0_6, %c0_7] : memref<8x1xf32, #tpu.memory_space<vmem>>, vector<8x1xf32>
    tpu.vector_store %arg6[%c0_6, %c0_7], %10 {strides = array<i32>} : memref<8x1xf32, #tpu.memory_space<vmem>>, vector<8x1xf32>,
    %c0_i32_8 = arith.constant 0 : i32
    %12 = arith.cmpi eq, %arg1, %c0_i32_8 : i32
    %13 = arith.extui %12 : i1 to i32
    %c0_i32_9 = arith.constant 0 : i32
    %14 = arith.cmpi ne, %13, %c0_i32_9 : i32
    scf.if %14 {
      %c0_10 = arith.constant 0 : index
      %c0_11 = arith.constant 0 : index
      %15 = vector.load %arg6[%c0_10, %c0_11] : memref<8x1xf32, #tpu.memory_space<vmem>>, vector<8x1xf32>
      %c0_12 = arith.constant 0 : index
      %c0_13 = arith.constant 0 : index
      %16 = memref.load %arg4[%c0_12, %c0_13] : memref<1x1xf32, #tpu.memory_space<smem>>
      %17 = vector.broadcast %16 : f32 to vector<8x1xf32>
      %18 = arith.addf %15, %17 : vector<8x1xf32>
      %c0_14 = arith.constant 0 : index
      %c0_15 = arith.constant 0 : index
      %19 = vector.load %arg5[%c0_14, %c0_15] : memref<8x1xf32, #tpu.memory_space<vmem>>, vector<8x1xf32>
      tpu.vector_store %arg5[%c0_14, %c0_15], %18 {strides = array<i32>} : memref<8x1xf32, #tpu.memory_space<vmem>>, vector<8x1xf32>,
    } else {
    }
    return
  }
  func.func @transform_0(%arg0: i32, %arg1: i32) -> (i32, i32) {
    %c0_i32 = arith.constant 0 : i32
    return %arg0, %arg1 : i32, i32
  }
  func.func @transform_1(%arg0: i32, %arg1: i32) -> (i32, i32) {
    %c0_i32 = arith.constant 0 : i32
    %c0_i32_0 = arith.constant 0 : i32
    return %c0_i32, %arg1 : i32, i32
  }
  func.func @transform_2(%arg0: i32, %arg1: i32) -> (i32, i32) {
    %c0_i32 = arith.constant 0 : i32
    %c0_i32_0 = arith.constant 0 : i32
    %c0_i32_1 = arith.constant 0 : i32
    return %c0_i32, %c0_i32_0 : i32, i32
  }
  func.func @transform_3(%arg0: i32, %arg1: i32) -> (i32, i32) {
    %c0_i32 = arith.constant 0 : i32
    %c0_i32_0 = arith.constant 0 : i32
    return %arg0, %c0_i32 : i32, i32
  }
}

</mosaic_0001>

<llo_original>
// kernel: tpu_custom_call.1
$region0: #{tpu_custom_call.1}
  #allocation0 [shape = 'u32[]', space=smem, size = 0x4, offset = 0x4, fixed_abs, tag = 'smem constant byte address 0x4 - core index']
  #allocation1 [shape = 'u32[144,128]{1,0:T(1,128)}', space=vmem, size = 0x12000, scoped, tag = 'internal scratch']
  #allocation2 [shape = 'f32[8,1]{1,0:T(8,128)}', space=vmem, size = 0x1000, scoped, tag = 'scratch operand']
  #allocation3 [shape = 'f32[1,1]{1,0:T(1,128)S(6)}', space=smem, size = 0x200, scoped, tag = 'scoped memory for tpu_custom_call.1']
  %s0 = inlined_call_operand.hbm [shape: f32[8,32], index: 0, kind: input, shape index: {}]
  %s1 = inlined_call_operand.vmem [shape: f32[1,32], index: 1, kind: input, shape index: {}]
  %s2 = inlined_call_operand.<no memory space> [shape: f32[1,1], index: 2, kind: input, shape index: {}]
  %s3 = inlined_call_operand.vmem [shape: f32[8,1], index: 3, kind: output, shape index: {}]
  %s4 = sld [smem:[#allocation0]]
  $region34: #{tpu_custom_call.1} parent=0
    _
  %s6 = ssub.s32 1, %s4
  %s7 = scalar_select 0, %s6, %s4
  %8 = sst [smem:[#allocation3]] %s2
  $region1: #{tpu_custom_call.1} parent=0
    #allocation4 [shape = 'u8[4096]{0}', space=vmem, size = 0x1000, scoped, tag = 'input window, operand 0, single buffered']
    #allocation5 [shape = 's32[1]{0}', space=sflag, size = 0x4, scoped, tag = 'scoped memory for tpu_custom_call.1']
    %9 = vsyncpa [#allocation5], 0
    // Predicated region
    $region2: #{tpu_custom_call.1} parent=1 // pred_check
      _
    $region3: #{tpu_custom_call.1} parent=1 // pred_check_branch
      %11 = sbr.rel (0) target = $region5
    $region4: #{tpu_custom_call.1} parent=1 // pred_region
      %s13 = ssub.s32 128, 128
      %14 = vsyncadd [#allocation5], %s13
      %s16 = sshll.u32 [#allocation4], 4
      %s17 = int_to_ptr.vmem [resolvable:$true] %s16
      %19 = dma.hbm_to_vmem [thread:$0]  %s0, 128, %s17, [#allocation5]
    $region5: #{tpu_custom_call.1} parent=1 // pred_fallthru
      _
    // Predicated region
    $region6: #{tpu_custom_call.1} parent=1 // pred_check
      _
    $region7: #{tpu_custom_call.1} parent=1 // pred_check_branch
      %21 = sbr.rel (0) target = $region9
    $region8: #{tpu_custom_call.1} parent=1 // pred_region
      _
    $region9: #{tpu_custom_call.1} parent=1 // pred_fallthru
      _
    // Predicated region
    $region10: #{tpu_custom_call.1} parent=1 // pred_check
      _
    $region11: #{tpu_custom_call.1} parent=1 // pred_check_branch
      %23 = sbr.rel (0) target = $region13
    $region12: #{tpu_custom_call.1} parent=1 // pred_region
      _
    $region13: #{tpu_custom_call.1} parent=1 // pred_fallthru
      _
    // Predicated region
    $region14: #{tpu_custom_call.1} parent=1 // pred_check
      _
    $region15: #{tpu_custom_call.1} parent=1 // pred_check_branch
      %25 = sbr.rel (0) target = $region17
    $region16: #{tpu_custom_call.1} parent=1 // pred_region
      %26 = dma.done [#allocation5], 128
    $region17: #{tpu_custom_call.1} parent=1 // pred_fallthru
      _
    %p27 = scmp.eq.s32.totalorder 0, 0
    // Predicated region
    $region18: #{tpu_custom_call.1} parent=1 // pred_check
      %p28 = pneg %p27
    $region19: #{tpu_custom_call.1} parent=1 // pred_check_branch
      %30 = sbr.rel (%p28) target = $region21
    $region20: #{tpu_custom_call.1} parent=1 // pred_region
      %vm31 = vcmask 7168
      %32 = vst.msk [vmem:[#allocation2] sm:$0xff] %vm31, 0.0
    $region21: #{tpu_custom_call.1} parent=1 // pred_fallthru
      _
    %v33 = vld [vmem:[#allocation2] sm:$0xff]
    %v34 = vld [vmem:[#allocation4] sm:$0xff]
    %v35 = vld [vmem:[%s1] sm:$0x1]
    %v37 = vlaneseq
    %v38 = vshrl.u32 %v37, 7
    %v39 = vsub.s32 0, %v38
    %v40 = vrot.slane %v35, %v39
    %v42 = vmul.f32 %v34, %v40
    %vm43 = vcmask 261120
    %v44 = vsel %vm43, %v42, 0.0
    %45 = vadd.xlane.f32.xlu0 %v44
    %v46 = vpop.xlane.xlu0 %45
    %v47 = vadd.f32 %v33, %v46
    %vm48 = vcmask 7168
    %49 = vst.msk [vmem:[#allocation2] sm:$0xff] %vm48, %v47
    // Predicated region
    $region22: #{tpu_custom_call.1} parent=1 // pred_check
      %p50 = pneg %p27
    $region23: #{tpu_custom_call.1} parent=1 // pred_check_branch
      %52 = sbr.rel (%p50) target = $region25
    $region24: #{tpu_custom_call.1} parent=1 // pred_region
      %v53 = vld [vmem:[#allocation2] sm:$0xff]
      %s54 = sld [smem:[#allocation3]]
      %v55 = vstv %s54
      %v56 = vadd.f32 %v53, %v55
      %57 = vst.msk [vmem:[%s3] sm:$0xff] %vm48, %v56
    $region25: #{tpu_custom_call.1} parent=1 // pred_fallthru
      _
    // Predicated region
    $region26: #{tpu_custom_call.1} parent=1 // pred_check
      _
    $region27: #{tpu_custom_call.1} parent=1 // pred_check_branch
      %59 = sbr.rel (0) target = $region29
    $region28: #{tpu_custom_call.1} parent=1 // pred_region
      _
    $region29: #{tpu_custom_call.1} parent=1 // pred_fallthru
      _
    // Predicated region
    $region30: #{tpu_custom_call.1} parent=1 // pred_check
      _
    $region31: #{tpu_custom_call.1} parent=1 // pred_check_branch
      %61 = sbr.rel (0) target = $region33
    $region32: #{tpu_custom_call.1} parent=1 // pred_region
      _
    $region33: #{tpu_custom_call.1} parent=1 // pred_fallthru
      _
    %62 = vsyncpa [#allocation5], 1

</llo_original>
